<compile_context>
chip_gen: v6e
topology: v6e:2x2x1
jax: 0.10.0
libtpu: 0.0.40
codegen_flags: <defaults>
</compile_context>

<pallas_src>
import functools

import jax
import jax.numpy as jnp
from jax import lax
from jax.experimental import pallas as pl
from jax.experimental.pallas import tpu as pltpu


def _flow_warp_kernel(img_ref, uv_ref, out_ref, *, w, h, H_img, W_img, TP,
                      uv_resident):
    # img_ref: (1, C*H_img, W_img)   image, channel-flattened (free reshape)
    # uv_ref:  (1, 2, P_pad) if uv_resident else (1, 2, TP)   flow, lane-dense
    # out_ref: (1, C, TP)            warped output chunk, lane-dense over pixels
    C = out_ref.shape[1]
    pt = pl.program_id(1)
    p_start = pl.multiple_of(pt * TP, TP)

    # ---- flow chunk for this pixel tile ----------------------------------
    if uv_resident:
        uvb = uv_ref[0, :, pl.ds(p_start, TP)].astype(jnp.float32)   # (2, TP)
    else:
        uvb = uv_ref[0].astype(jnp.float32)                          # (2, TP)
    u = uvb[0:1, :]
    v = uvb[1:2, :]

    # ---- recover meshgrid coords from the flat pixel index ---------------
    # p = i*h + j (meshgrid indexing='ij'): grid_x = i, grid_y = j.
    # Exact for P < 2^24: integers are exact in f32 and a single +/-1
    # correction repairs the reciprocal-multiply rounding.
    flat = (p_start
            + lax.broadcasted_iota(jnp.int32, (1, TP), 1)).astype(jnp.float32)
    if h == 1:
        gi = flat
        gj = jnp.zeros_like(flat)
    else:
        h_f = float(h)
        gi = jnp.floor(flat * (1.0 / h_f))
        gj = flat - gi * h_f
        too_hi = gj >= h_f
        too_lo = gj < 0.0
        gi = gi + jnp.where(too_hi, 1.0, 0.0) - jnp.where(too_lo, 1.0, 0.0)
        gj = gj - jnp.where(too_hi, h_f, 0.0) + jnp.where(too_lo, h_f, 0.0)

    # ---- module's normalization + grid_sample unnormalization ------------
    # X = 2*((gx+u)/w - 0.5), Y = 2*((gy+v)/h - 0.5)   (.cuda() is a no-op)
    Xn = 2.0 * ((gi + u) / float(w) - 0.5)
    Yn = 2.0 * ((gj + v) / float(h) - 0.5)
    # align_corners=False: pix = ((coord + 1)*size - 1)/2
    x_pix = ((Xn + 1.0) * float(W_img) - 1.0) * 0.5
    y_pix = ((Yn + 1.0) * float(H_img) - 1.0) * 0.5

    x0f = jnp.floor(x_pix)
    wx1 = x_pix - x0f
    wx0 = 1.0 - wx1
    y0f = jnp.floor(y_pix)
    wy1 = y_pix - y0f
    wy0 = 1.0 - wy1
    x0i = x0f.astype(jnp.int32)
    x1i = x0i + 1
    y0i = y0f.astype(jnp.int32)
    y1i = y0i + 1

    # ---- separable sparse sampling matrices (MXU orientation) ------------
    # int32 iota comparisons; out-of-range indices never match -> zero weight,
    # which is exactly padding_mode='zeros'.
    x_iota = lax.broadcasted_iota(jnp.int32, (W_img, TP), 0)
    CxT = (jnp.where(x_iota == x0i, wx0, 0.0) +
           jnp.where(x_iota == x1i, wx1, 0.0))                       # (W_img, TP)
    y_iota = lax.broadcasted_iota(jnp.int32, (H_img, TP), 0)
    RyT = (jnp.where(y_iota == y0i, wy0, 0.0) +
           jnp.where(y_iota == y1i, wy1, 0.0))                       # (H_img, TP)

    # ---- stage 1: horizontal interpolation on the MXU ---------------------
    #   T[c*H + y, p] = sum_x img[c, y, x] * Cx[x, p]
    img_rows = img_ref[0]                                 # (C*H_img, W_img), no cast
    T_all = jnp.dot(img_rows, CxT.astype(img_rows.dtype),
                    preferred_element_type=jnp.float32)   # (C*H_img, TP) f32

    # ---- stage 2: vertical interpolation, one fused multiply-reduce -------
    out = jnp.sum(T_all.reshape(C, H_img, TP) * RyT[None, :, :], axis=1)  # (C, TP)
    out_ref[0] = out.astype(out_ref.dtype)


def _round_up(x, m):
    return (x + m - 1) // m * m


def flow_warp(img, uv, w, h):
    """FlowWarper(w, h).forward(img, uv) — Pallas TPU implementation."""
    N, C, H_img, W_img = img.shape
    assert uv.shape == (N, 2, w, h), "uv spatial dims must be (w, h) (module's expand_as)"
    P = w * h
    assert P < (1 << 24), "flat pixel index must stay exactly representable in f32"

    # ---- pixel-tile size from an in-kernel VMEM budget (lane-dense) -------
    # Per-pixel-column f32 temporaries: CxT(W) + RyT(H) + T_all(C*H) +
    # stage-2 product (C*H) + out (C).
    bytes_per_lane = 4 * (W_img + H_img + 2 * C * H_img + 2 * C)
    tp_cap = max(128, min(2048, (6 * 1024 * 1024 // bytes_per_lane) // 128 * 128))
    P128 = _round_up(P, 128)
    if P128 <= tp_cap:
        TP = P128            # tiny level: collapse the pixel grid (one tile per batch)
    else:
        TP = tp_cap
    P_pad = _round_up(P, TP)
    n_pt = P_pad // TP

    # ---- layout plumbing: free reshapes only (no HBM transpose) -----------
    img_rows = img.reshape(N, C * H_img, W_img)
    uv_f = uv.reshape(N, 2, P)
    if P_pad != P:
        uv_f = jnp.pad(uv_f, ((0, 0), (0, 0), (0, P_pad - P)))

    # uv resident per batch element when cheap (kills n_pt tiny per-step DMAs).
    uv_itemsize = jnp.dtype(uv.dtype).itemsize
    uv_resident = 2 * 2 * P_pad * uv_itemsize <= (4 << 20)
    if uv_resident:
        uv_spec = pl.BlockSpec((1, 2, P_pad), lambda n, p: (n, 0, 0))
    else:
        uv_spec = pl.BlockSpec((1, 2, TP), lambda n, p: (n, 0, p))

    # ---- explicit VMEM budget (double-buffered blocks + tile temporaries) --
    itemsize = jnp.dtype(img.dtype).itemsize
    img_block = C * H_img * W_img * itemsize
    uv_block = (2 * P_pad if uv_resident else 2 * TP) * uv_itemsize
    out_block = C * TP * itemsize
    vmem_need = 2 * (img_block + uv_block + out_block) + bytes_per_lane * TP
    vmem_limit = int(min(max(2 * vmem_need, 32 << 20), 96 << 20))

    kernel = functools.partial(_flow_warp_kernel, w=w, h=h, H_img=H_img,
                               W_img=W_img, TP=TP, uv_resident=uv_resident)

    out_flat = pl.pallas_call(
        kernel,
        out_shape=jax.ShapeDtypeStruct((N, C, P_pad), img.dtype),
        grid=(N, n_pt),
        in_specs=[
            # Full image per batch element; block index constant across the
            # pixel-tile axis, so it stays VMEM-resident.
            pl.BlockSpec((1, C * H_img, W_img), lambda n, p: (n, 0, 0)),
            uv_spec,
        ],
        out_specs=pl.BlockSpec((1, C, TP), lambda n, p: (n, 0, p)),
        compiler_params=pltpu.CompilerParams(
            dimension_semantics=("parallel", "parallel"),
            vmem_limit_bytes=vmem_limit,
        ),
    )(img_rows, uv_f)

    out = out_flat[:, :, :P] if P_pad != P else out_flat
    return out.reshape(N, C, w, h)


def flow_warp_ref(img, uv, w, h):
    """Pure-JAX reference of the same semantics (for correctness check)."""
    N, C, H_img, W_img = img.shape
    u = uv[:, 0].astype(jnp.float32)
    v = uv[:, 1].astype(jnp.float32)
    gi = jnp.arange(w, dtype=jnp.float32)[:, None] + jnp.zeros((1, h), jnp.float32)
    gj = jnp.zeros((w, 1), jnp.float32) + jnp.arange(h, dtype=jnp.float32)[None, :]
    Xn = 2.0 * ((gi[None] + u) / w - 0.5)
    Yn = 2.0 * ((gj[None] + v) / h - 0.5)
    xp = ((Xn + 1.0) * W_img - 1.0) * 0.5
    yp = ((Yn + 1.0) * H_img - 1.0) * 0.5
    x0 = jnp.floor(xp); x1 = x0 + 1.0
    y0 = jnp.floor(yp); y1 = y0 + 1.0
    wx1 = xp - x0; wx0 = 1.0 - wx1
    wy1 = yp - y0; wy0 = 1.0 - wy1

    bidx = jnp.arange(N)[:, None, None, None]
    cidx = jnp.arange(C)[None, :, None, None]

    def gather(yc, xc):
        valid = ((xc >= 0) & (xc <= W_img - 1) &
                 (yc >= 0) & (yc <= H_img - 1)).astype(jnp.float32)
        xi = jnp.clip(xc, 0, W_img - 1).astype(jnp.int32)
        yi = jnp.clip(yc, 0, H_img - 1).astype(jnp.int32)
        vals = img[bidx, cidx, yi[:, None], xi[:, None]]
        return vals * valid[:, None]

    out = (gather(y0, x0) * (wy0 * wx0)[:, None] +
           gather(y0, x1) * (wy0 * wx1)[:, None] +
           gather(y1, x0) * (wy1 * wx0)[:, None] +
           gather(y1, x1) * (wy1 * wx1)[:, None])
    return out.astype(img.dtype)


if __name__ == "__main__":
    N, C, H, W = 2, 4, 16, 16
    w, h = H, W  # FlowWarper(w, h); must match uv spatial dims (module's expand_as)

    key = jax.random.PRNGKey(0)
    k_img, k_uv = jax.random.split(key)
    img = jax.random.normal(k_img, (N, C, H, W), dtype=jnp.float32)
    # small sub-pixel flows plus some larger ones (exercise zero padding)
    uv = 3.0 * jax.random.normal(k_uv, (N, 2, w, h), dtype=jnp.float32)

    out = flow_warp(img, uv, w, h)
    out = jax.block_until_ready(out)

    ref = jax.block_until_ready(flow_warp_ref(img, uv, w, h))
    assert out.shape == (N, C, w, h)
    assert jnp.max(jnp.abs(out - ref)) < 1e-4, "mismatch vs reference"

    print("KERNEL_OK")
</pallas_src>

<mosaic_0001>
module attributes {stable_mosaic.version = 11 : i64} {
  func.func @_flow_warp_kernel(%arg0: i32, %arg1: i32, %arg2: memref<1x64x16xf32, #tpu.memory_space<vmem>>, %arg3: memref<1x2x256xf32, #tpu.memory_space<vmem>>, %arg4: memref<1x4x256xf32, #tpu.memory_space<vmem>>) attributes {dimension_semantics = [#tpu.dimension_semantics<parallel>, #tpu.dimension_semantics<parallel>], iteration_bounds = array<i64: 2, 1>, scalar_prefetch = 0 : i64, scratch_operands = 0 : i64, tpu.core_type = #tpu.core_type<tc>, window_params = [{transform_indices = @transform_0, window_bounds = array<i64: 1, 64, 16>}, {transform_indices = @transform_1, window_bounds = array<i64: 1, 2, 256>}, {transform_indices = @transform_2, window_bounds = array<i64: 1, 4, 256>}]} {
    %c256_i32 = arith.constant 256 : i32
    %0 = arith.muli %arg1, %c256_i32 : i32
    %1 = tpu.assume_multiple %0, 256 : i32
    %c0 = arith.constant 0 : index
    %c0_0 = arith.constant 0 : index
    %2 = arith.index_cast %1 : i32 to index
    %3 = vector.load %arg3[%c0, %c0_0, %2] : memref<1x2x256xf32, #tpu.memory_space<vmem>>, vector<1x2x256xf32>
    %4 = vector.shape_cast %3 : vector<1x2x256xf32> to vector<2x256xf32>
    %5 = vector.extract_strided_slice %4 {offsets = [0, 0], sizes = [1, 256], strides = [1, 1]} : vector<2x256xf32> to vector<1x256xf32>
    %6 = vector.extract_strided_slice %4 {offsets = [1, 0], sizes = [1, 256], strides = [1, 1]} : vector<2x256xf32> to vector<1x256xf32>
    %7 = tpu.iota {dimensions = array<i32: 1>} : vector<1x256xi32>
    %8 = vector.broadcast %1 : i32 to vector<1x256xi32>
    %9 = arith.addi %8, %7 : vector<1x256xi32>
    %10 = arith.sitofp %9 : vector<1x256xi32> to vector<1x256xf32>
    %cst = arith.constant 6.250000e-02 : f32
    %11 = vector.broadcast %cst : f32 to vector<1x256xf32>
    %12 = arith.mulf %10, %11 : vector<1x256xf32>
    %13 = math.floor %12 : vector<1x256xf32>
    %cst_1 = arith.constant 1.600000e+01 : f32
    %14 = vector.broadcast %cst_1 : f32 to vector<1x256xf32>
    %15 = arith.mulf %13, %14 : vector<1x256xf32>
    %16 = arith.subf %10, %15 : vector<1x256xf32>
    %cst_2 = arith.constant 1.600000e+01 : f32
    %17 = vector.broadcast %cst_2 : f32 to vector<1x256xf32>
    %18 = arith.cmpf oge, %16, %17 : vector<1x256xf32>
    %cst_3 = arith.constant 0.000000e+00 : f32
    %19 = vector.broadcast %cst_3 : f32 to vector<1x256xf32>
    %20 = arith.cmpf olt, %16, %19 : vector<1x256xf32>
    %cst_4 = arith.constant 1.000000e+00 : f32
    %cst_5 = arith.constant 0.000000e+00 : f32
    %21 = vector.broadcast %cst_4 : f32 to vector<1x256xf32>
    %22 = vector.broadcast %cst_5 : f32 to vector<1x256xf32>
    %23 = arith.select %18, %21, %22 : vector<1x256xi1>, vector<1x256xf32>
    %24 = arith.addf %13, %23 : vector<1x256xf32>
    %cst_6 = arith.constant 1.000000e+00 : f32
    %cst_7 = arith.constant 0.000000e+00 : f32
    %25 = vector.broadcast %cst_6 : f32 to vector<1x256xf32>
    %26 = vector.broadcast %cst_7 : f32 to vector<1x256xf32>
    %27 = arith.select %20, %25, %26 : vector<1x256xi1>, vector<1x256xf32>
    %28 = arith.subf %24, %27 : vector<1x256xf32>
    %cst_8 = arith.constant 1.600000e+01 : f32
    %cst_9 = arith.constant 0.000000e+00 : f32
    %29 = vector.broadcast %cst_8 : f32 to vector<1x256xf32>
    %30 = vector.broadcast %cst_9 : f32 to vector<1x256xf32>
    %31 = arith.select %18, %29, %30 : vector<1x256xi1>, vector<1x256xf32>
    %32 = arith.subf %16, %31 : vector<1x256xf32>
    %cst_10 = arith.constant 1.600000e+01 : f32
    %cst_11 = arith.constant 0.000000e+00 : f32
    %33 = vector.broadcast %cst_10 : f32 to vector<1x256xf32>
    %34 = vector.broadcast %cst_11 : f32 to vector<1x256xf32>
    %35 = arith.select %20, %33, %34 : vector<1x256xi1>, vector<1x256xf32>
    %36 = arith.addf %32, %35 : vector<1x256xf32>
    %37 = arith.addf %28, %5 : vector<1x256xf32>
    %cst_12 = arith.constant 1.600000e+01 : f32
    %38 = vector.broadcast %cst_12 : f32 to vector<1x256xf32>
    %39 = arith.divf %37, %38 : vector<1x256xf32>
    %cst_13 = arith.constant 5.000000e-01 : f32
    %40 = vector.broadcast %cst_13 : f32 to vector<1x256xf32>
    %41 = arith.subf %39, %40 : vector<1x256xf32>
    %cst_14 = arith.constant 2.000000e+00 : f32
    %42 = vector.broadcast %cst_14 : f32 to vector<1x256xf32>
    %43 = arith.mulf %42, %41 : vector<1x256xf32>
    %44 = arith.addf %36, %6 : vector<1x256xf32>
    %cst_15 = arith.constant 1.600000e+01 : f32
    %45 = vector.broadcast %cst_15 : f32 to vector<1x256xf32>
    %46 = arith.divf %44, %45 : vector<1x256xf32>
    %cst_16 = arith.constant 5.000000e-01 : f32
    %47 = vector.broadcast %cst_16 : f32 to vector<1x256xf32>
    %48 = arith.subf %46, %47 : vector<1x256xf32>
    %cst_17 = arith.constant 2.000000e+00 : f32
    %49 = vector.broadcast %cst_17 : f32 to vector<1x256xf32>
    %50 = arith.mulf %49, %48 : vector<1x256xf32>
    %cst_18 = arith.constant 1.000000e+00 : f32
    %51 = vector.broadcast %cst_18 : f32 to vector<1x256xf32>
    %52 = arith.addf %43, %51 : vector<1x256xf32>
    %cst_19 = arith.constant 1.600000e+01 : f32
    %53 = vector.broadcast %cst_19 : f32 to vector<1x256xf32>
    %54 = arith.mulf %52, %53 : vector<1x256xf32>
    %cst_20 = arith.constant 1.000000e+00 : f32
    %55 = vector.broadcast %cst_20 : f32 to vector<1x256xf32>
    %56 = arith.subf %54, %55 : vector<1x256xf32>
    %cst_21 = arith.constant 5.000000e-01 : f32
    %57 = vector.broadcast %cst_21 : f32 to vector<1x256xf32>
    %58 = arith.mulf %56, %57 : vector<1x256xf32>
    %cst_22 = arith.constant 1.000000e+00 : f32
    %59 = vector.broadcast %cst_22 : f32 to vector<1x256xf32>
    %60 = arith.addf %50, %59 : vector<1x256xf32>
    %cst_23 = arith.constant 1.600000e+01 : f32
    %61 = vector.broadcast %cst_23 : f32 to vector<1x256xf32>
    %62 = arith.mulf %60, %61 : vector<1x256xf32>
    %cst_24 = arith.constant 1.000000e+00 : f32
    %63 = vector.broadcast %cst_24 : f32 to vector<1x256xf32>
    %64 = arith.subf %62, %63 : vector<1x256xf32>
    %cst_25 = arith.constant 5.000000e-01 : f32
    %65 = vector.broadcast %cst_25 : f32 to vector<1x256xf32>
    %66 = arith.mulf %64, %65 : vector<1x256xf32>
    %67 = math.floor %58 : vector<1x256xf32>
    %68 = arith.subf %58, %67 : vector<1x256xf32>
    %cst_26 = arith.constant 1.000000e+00 : f32
    %69 = vector.broadcast %cst_26 : f32 to vector<1x256xf32>
    %70 = arith.subf %69, %68 : vector<1x256xf32>
    %71 = math.floor %66 : vector<1x256xf32>
    %72 = arith.subf %66, %71 : vector<1x256xf32>
    %cst_27 = arith.constant 1.000000e+00 : f32
    %73 = vector.broadcast %cst_27 : f32 to vector<1x256xf32>
    %74 = arith.subf %73, %72 : vector<1x256xf32>
    %75 = arith.fptosi %67 : vector<1x256xf32> to vector<1x256xi32>
    %c1_i32 = arith.constant 1 : i32
    %76 = vector.broadcast %c1_i32 : i32 to vector<1x256xi32>
    %77 = arith.addi %75, %76 : vector<1x256xi32>
    %78 = arith.fptosi %71 : vector<1x256xf32> to vector<1x256xi32>
    %c1_i32_28 = arith.constant 1 : i32
    %79 = vector.broadcast %c1_i32_28 : i32 to vector<1x256xi32>
    %80 = arith.addi %78, %79 : vector<1x256xi32>
    %81 = tpu.iota {dimensions = array<i32: 0>} : vector<16x256xi32>
    %82 = vector.broadcast %75 : vector<1x256xi32> to vector<16x256xi32>
    %83 = arith.cmpi eq, %81, %82 : vector<16x256xi32>
    %cst_29 = arith.constant 0.000000e+00 : f32
    %84 = vector.shape_cast %70 : vector<1x256xf32> to vector<1x256xf32>
    %85 = vector.broadcast %84 : vector<1x256xf32> to vector<16x256xf32>
    %86 = vector.broadcast %cst_29 : f32 to vector<16x256xf32>
    %87 = arith.select %83, %85, %86 : vector<16x256xi1>, vector<16x256xf32>
    %88 = vector.broadcast %77 : vector<1x256xi32> to vector<16x256xi32>
    %89 = arith.cmpi eq, %81, %88 : vector<16x256xi32>
    %cst_30 = arith.constant 0.000000e+00 : f32
    %90 = vector.shape_cast %68 : vector<1x256xf32> to vector<1x256xf32>
    %91 = vector.broadcast %90 : vector<1x256xf32> to vector<16x256xf32>
    %92 = vector.broadcast %cst_30 : f32 to vector<16x256xf32>
    %93 = arith.select %89, %91, %92 : vector<16x256xi1>, vector<16x256xf32>
    %94 = arith.addf %87, %93 : vector<16x256xf32>
    %95 = tpu.iota {dimensions = array<i32: 0>} : vector<16x256xi32>
    %96 = vector.broadcast %78 : vector<1x256xi32> to vector<16x256xi32>
    %97 = arith.cmpi eq, %95, %96 : vector<16x256xi32>
    %cst_31 = arith.constant 0.000000e+00 : f32
    %98 = vector.shape_cast %74 : vector<1x256xf32> to vector<1x256xf32>
    %99 = vector.broadcast %98 : vector<1x256xf32> to vector<16x256xf32>
    %100 = vector.broadcast %cst_31 : f32 to vector<16x256xf32>
    %101 = arith.select %97, %99, %100 : vector<16x256xi1>, vector<16x256xf32>
    %102 = vector.broadcast %80 : vector<1x256xi32> to vector<16x256xi32>
    %103 = arith.cmpi eq, %95, %102 : vector<16x256xi32>
    %cst_32 = arith.constant 0.000000e+00 : f32
    %104 = vector.shape_cast %72 : vector<1x256xf32> to vector<1x256xf32>
    %105 = vector.broadcast %104 : vector<1x256xf32> to vector<16x256xf32>
    %106 = vector.broadcast %cst_32 : f32 to vector<16x256xf32>
    %107 = arith.select %103, %105, %106 : vector<16x256xi1>, vector<16x256xf32>
    %108 = arith.addf %101, %107 : vector<16x256xf32>
    %c0_33 = arith.constant 0 : index
    %c0_34 = arith.constant 0 : index
    %c0_35 = arith.constant 0 : index
    %109 = vector.load %arg2[%c0_33, %c0_34, %c0_35] : memref<1x64x16xf32, #tpu.memory_space<vmem>>, vector<1x64x16xf32>
    %110 = vector.shape_cast %109 : vector<1x64x16xf32> to vector<64x16xf32>
    %cst_36 = arith.constant dense<0.000000e+00> : vector<64x256xf32>
    %111 = tpu.matmul %110, %94, %cst_36 {dimension_numbers = #tpu.dot_dimension_numbers<[1], [0], [0], [1], [0, 0, 1, 1], [], []>} : vector<64x16xf32>, vector<16x256xf32>, vector<64x256xf32> -> vector<64x256xf32>
    %112 = vector.shape_cast %111 : vector<64x256xf32> to vector<4x16x256xf32>
    %113 = vector.shape_cast %108 : vector<16x256xf32> to vector<1x16x256xf32>
    %114 = vector.broadcast %113 : vector<1x16x256xf32> to vector<4x16x256xf32>
    %115 = arith.mulf %112, %114 : vector<4x16x256xf32>
    %cst_37 = arith.constant dense<0.000000e+00> : vector<4x256xf32>
    %116 = vector.multi_reduction <add>, %115, %cst_37 [1] : vector<4x16x256xf32> to vector<4x256xf32>
    %c0_38 = arith.constant 0 : index
    %c0_39 = arith.constant 0 : index
    %c0_40 = arith.constant 0 : index
    %117 = vector.load %arg4[%c0_38, %c0_39, %c0_40] : memref<1x4x256xf32, #tpu.memory_space<vmem>>, vector<1x4x256xf32>
    %118 = vector.shape_cast %117 : vector<1x4x256xf32> to vector<4x256xf32>
    %119 = vector.shape_cast %116 : vector<4x256xf32> to vector<1x4x256xf32>
    tpu.vector_store %arg4[%c0_38, %c0_39, %c0_40], %119 {strides = array<i32>} : memref<1x4x256xf32, #tpu.memory_space<vmem>>, vector<1x4x256xf32>,
    return
  }
  func.func @transform_0(%arg0: i32, %arg1: i32) -> (i32, i32, i32) {
    %c0_i32 = arith.constant 0 : i32
    %c0_i32_0 = arith.constant 0 : i32
    %c0_i32_1 = arith.constant 0 : i32
    return %arg0, %c0_i32, %c0_i32_0 : i32, i32, i32
  }
  func.func @transform_1(%arg0: i32, %arg1: i32) -> (i32, i32, i32) {
    %c0_i32 = arith.constant 0 : i32
    %c0_i32_0 = arith.constant 0 : i32
    %c0_i32_1 = arith.constant 0 : i32
    return %arg0, %c0_i32, %c0_i32_0 : i32, i32, i32
  }
  func.func @transform_2(%arg0: i32, %arg1: i32) -> (i32, i32, i32) {
    %c0_i32 = arith.constant 0 : i32
    %c0_i32_0 = arith.constant 0 : i32
    return %arg0, %c0_i32, %arg1 : i32, i32, i32
  }
}

</mosaic_0001>

<llo_original>
// kernel: tpu_custom_call.1
$region0: #{tpu_custom_call.1}
  #allocation0 [shape = 'u32[]', space=smem, size = 0x4, offset = 0x4, fixed_abs, tag = 'smem constant byte address 0x4 - core index']
  #allocation1 [shape = 'u32[144,128]{1,0:T(1,128)}', space=vmem, size = 0x12000, scoped, tag = 'internal scratch']
  %s0 = inlined_call_operand.vmem [shape: f32[2,64,16], index: 0, kind: input, shape index: {}]
  %s1 = inlined_call_operand.vmem [shape: f32[2,2,256], index: 1, kind: input, shape index: {}]
  %s2 = inlined_call_operand.hbm [shape: f32[2,4,256], index: 2, kind: output, shape index: {}]
  %s3 = sld [smem:[#allocation0]]
  $region41: #{tpu_custom_call.1} parent=0
    _
  %s5 = ssub.s32 1, %s3
  %s6 = scalar_select 0, %s5, %s3
  $region1: #{tpu_custom_call.1} parent=0
    #allocation2 [shape = 'u8[8192]{0}', space=vmem, size = 0x2000, scoped, tag = 'output window, operand 0']
    #allocation3 [shape = 's32[2]{0}', space=sflag, size = 0x8, scoped, tag = 'scoped memory for tpu_custom_call.1']
    %7 = vsyncpa [#allocation3], 0
    %s8 = scalar_lea.sflag [#allocation3], 1
    %9 = vsyncpa %s8, 0
    loop: start=0, step=1, limit=4
    $region2: #{tpu_custom_call.1} parent=1 // loop_pre_header
      _
    $region3: #{tpu_custom_call.1} parent=1 // loop_header
      %s11 = sphi 0, %s15
      %p12 = scmp.ge.s32.totalorder %s11, 4
      %s18 = sphi 0, %s30
      %s19 = sphi 0, %s26
      %s20 = sphi 0, %s18
      %s21 = sphi 0, %s19
      %s22 = sphi 0, %s20
      %s23 = sphi 0, %s21
      %s33 = sphi 0, %s35
      %s36 = sphi 0, %s33
      %s37 = sphi 0, %s36
      %s53 = sphi 0, %s37
      %s59 = sphi 0, %s61
      %s62 = sphi 0, %s59
      %s63 = sphi 0, %s62
      %s79 = sphi 0, %s63
      %s87 = sphi 0, %s89
      %s90 = sphi 0, %s87
      %s91 = sphi 0, %s90
      %s107 = sphi 0, %s91
    $region4: #{tpu_custom_call.1} parent=1 // loop_header_branch
      %14 = sbr.rel (%p12) target = $region8
    $region5: #{tpu_custom_call.1} parent=1 // loop_body
      %s16 = ssub.s32 %s11, 1
      %s17 = ssub.s32 %s11, 2
      %s24 = sadd.s32 1, %s19
      %p25 = scmp.ge.s32.totalorder %s24, 1
      %s26 = scalar_select %p25, 0, %s24
      %s27 = sadd.s32 1, %s18
      %s28 = scalar_select %p25, %s27, %s18
      %p29 = scmp.ge.s32.totalorder %s28, 2
      %s30 = scalar_select %p29, 0, %s28
      %s31 = ssub.s32 %s18, %s30
      %p32 = scmp.eq.s32.totalorder %s31, 0
      %s34 = sadd.s32 %s33, 1
      %s35 = scalar_select %p32, %s33, %s34
      %p38 = pneg %p32
      %p39 = scmp.eq.s32.totalorder %s11, 1
      %p40 = por %p38, %p39
      %p41 = scmp.ne.s32.totalorder %s33, %s36
      %p42 = scmp.eq.s32.totalorder %s11, 0
      %p43 = por %p41, %p42
      %p44 = scmp.ne.s32.totalorder %s33, %s36
      %p45 = scmp.eq.s32.totalorder %s16, 1
      %p46 = por %p44, %p45
      %p47 = scmp.ne.s32.totalorder %s36, %s37
      %p48 = scmp.eq.s32.totalorder %s16, 0
      %p49 = por %p47, %p48
      %p50 = scmp.ne.s32.totalorder %s36, %s37
      %p51 = scmp.eq.s32.totalorder %s17, 1
      %p52 = por %p50, %p51
      %p54 = scmp.ne.s32.totalorder %s37, %s53
      %p55 = scmp.eq.s32.totalorder %s17, 0
      %p56 = por %p54, %p55
      %s57 = ssub.s32 %s18, %s30
      %p58 = scmp.eq.s32.totalorder %s57, 0
      %s60 = sadd.s32 %s59, 1
      %s61 = scalar_select %p58, %s59, %s60
      %p64 = pneg %p58
      %p65 = scmp.eq.s32.totalorder %s11, 1
      %p66 = por %p64, %p65
      %p67 = scmp.ne.s32.totalorder %s59, %s62
      %p68 = scmp.eq.s32.totalorder %s11, 0
      %p69 = por %p67, %p68
      %p70 = scmp.ne.s32.totalorder %s59, %s62
      %p71 = scmp.eq.s32.totalorder %s16, 1
      %p72 = por %p70, %p71
      %p73 = scmp.ne.s32.totalorder %s62, %s63
      %p74 = scmp.eq.s32.totalorder %s16, 0
      %p75 = por %p73, %p74
      %p76 = scmp.ne.s32.totalorder %s62, %s63
      %p77 = scmp.eq.s32.totalorder %s17, 1
      %p78 = por %p76, %p77
      %p80 = scmp.ne.s32.totalorder %s63, %s79
      %p81 = scmp.eq.s32.totalorder %s17, 0
      %p82 = por %p80, %p81
      %s83 = ssub.s32 %s18, %s30
      %s84 = ssub.s32 %s19, %s26
      %s85 = sor.u32 %s83, %s84
      %p86 = scmp.eq.s32.totalorder %s85, 0
      %s88 = sadd.s32 %s87, 1
      %s89 = scalar_select %p86, %s87, %s88
      %p92 = pneg %p86
      %p93 = scmp.eq.s32.totalorder %s11, 1
      %p94 = por %p92, %p93
      %p95 = scmp.ne.s32.totalorder %s87, %s90
      %p96 = scmp.eq.s32.totalorder %s11, 0
      %p97 = por %p95, %p96
      %p98 = scmp.ne.s32.totalorder %s87, %s90
      %p99 = scmp.eq.s32.totalorder %s16, 1
      %p100 = por %p98, %p99
      %p101 = scmp.ne.s32.totalorder %s90, %s91
      %p102 = scmp.eq.s32.totalorder %s16, 0
      %p103 = por %p101, %p102
      %p104 = scmp.ne.s32.totalorder %s90, %s91
      %p105 = scmp.eq.s32.totalorder %s17, 1
      %p106 = por %p104, %p105
      %p108 = scmp.ne.s32.totalorder %s91, %s107
      %p109 = scmp.eq.s32.totalorder %s17, 0
      %p110 = por %p108, %p109
      %p111 = scmp.le.s32.totalorder 1, %s11
      %p112 = scmp.lt.s32.totalorder %s11, 3
      %p113 = pnand %p111, %p112
      %p114 = pneg %p113
      // Predicated region
      $region9: #{tpu_custom_call.1} parent=5 // pred_check
        _
      $region10: #{tpu_custom_call.1} parent=5 // pred_check_branch
        %116 = sbr.rel (%p113) target = $region12
      $region11: #{tpu_custom_call.1} parent=5 // pred_region
        %s117 = ssub.s32 %s11, 1
      $region12: #{tpu_custom_call.1} parent=5 // pred_fallthru
        _
      %p118 = scmp.lt.s32.totalorder %s11, 2
      // Predicated region
      $region13: #{tpu_custom_call.1} parent=5 // pred_check
        %p119 = pneg %p118
      $region14: #{tpu_custom_call.1} parent=5 // pred_check_branch
        %121 = sbr.rel (%p119) target = $region16
      $region15: #{tpu_custom_call.1} parent=5 // pred_region
        // Predicated region
        $region17: #{tpu_custom_call.1} parent=15 // pred_check
          %p122 = pneg %p43
        $region18: #{tpu_custom_call.1} parent=15 // pred_check_branch
          %124 = sbr.rel (%p122) target = $region20
        $region19: #{tpu_custom_call.1} parent=15 // pred_region
          %p125 = scmp.lt.s32.totalorder %s18, 1
          %s126 = scalar_select %p125, %s18, 1
          %s127 = smul.addr %s126, 8
          %s128 = smul.addr %s127, 8
          %s129 = scalar_lea.vmem %s0, %s128
        $region20: #{tpu_custom_call.1} parent=15 // pred_fallthru
          _
        // Predicated region
        $region21: #{tpu_custom_call.1} parent=15 // pred_check
          %p130 = pneg %p69
        $region22: #{tpu_custom_call.1} parent=15 // pred_check_branch
          %132 = sbr.rel (%p130) target = $region24
        $region23: #{tpu_custom_call.1} parent=15 // pred_region
          %p133 = scmp.lt.s32.totalorder %s18, 1
          %s134 = scalar_select %p133, %s18, 1
          %s135 = smul.addr %s134, 2
          %s136 = smul.addr %s135, 2
          %s137 = scalar_lea.vmem %s1, %s136
        $region24: #{tpu_custom_call.1} parent=15 // pred_fallthru
          _
      $region16: #{tpu_custom_call.1} parent=5 // pred_fallthru
        _
      %p138 = scmp.le.s32.totalorder 1, %s11
      %p139 = scmp.lt.s32.totalorder %s11, 3
      %p140 = pnand %p138, %p139
      %p141 = pneg %p140
      // Predicated region
      $region25: #{tpu_custom_call.1} parent=5 // pred_check
        _
      $region26: #{tpu_custom_call.1} parent=5 // pred_check_branch
        %143 = sbr.rel (%p140) target = $region28
      $region27: #{tpu_custom_call.1} parent=5 // pred_region
        %s144 = ssub.s32 %s11, 1
        %p145 = scmp.lt.s32.totalorder %s20, 1
        %s146 = scalar_select %p145, %s20, 1
        %s147 = smul.addr %s146, 8
        %s148 = smul.addr %s147, 8
        %s149 = scalar_lea.vmem %s0, %s148
        %p150 = pneg %p49
        %p151 = pneg %p46
        %p152 = scmp.lt.s32.totalorder %s20, 1
        %s153 = scalar_select %p152, %s20, 1
        %s154 = smul.addr %s153, 2
        %s155 = smul.addr %s154, 2
        %s156 = scalar_lea.vmem %s1, %s155
        %p157 = pneg %p75
        %p158 = pneg %p72
        %p159 = pneg %p103
        %p160 = pneg %p100
        %s161 = sand.u32 %s90, 1
        %s162 = scalar_lea.sflag [#allocation3], %s161
        %s163 = sand.u32 %s90, 1
        %s164 = smul.addr %s163, 8
        %s165 = scalar_lea.vmem [#allocation2], %s164
        %p166 = scmp.lt.s32.totalorder %s20, 1
        %s167 = scalar_select %p166, %s20, 1
        %s168 = smul.addr %s167, 8
        %s169 = smul.addr %s168, 8
        %s170 = scalar_lea.vmem %s0, %s169
        %p171 = scmp.lt.s32.totalorder %s20, 1
        %s172 = scalar_select %p171, %s20, 1
        %s173 = smul.addr %s172, 2
        %s174 = smul.addr %s173, 2
        %s175 = scalar_lea.vmem %s1, %s174
        %s176 = smul.u32 2, %s21
        %s177 = smul.u32 %s21, 256
        %s178 = sshra.s32 %s177, 7
        %s179 = sand.u32 %s177, 127
        %s180 = smul.addr %s178, 2
        %s181 = scalar_lea.vmem %s175, %s180
        %v182 = vld [vmem:[%s181] sm:$0xf]
        %v183 = vlaneseq
        %v184 = vand.u32 %v183, 127
        %v185 = vadd.s32 %v184, 128
        %v186 = vstv %s177
        %v187 = vadd.s32 %v186, %v184
        %v188 = vadd.s32 %v186, %v185
        %v189 = vcvt.s32.f32 %v187
        %v190 = vcvt.s32.f32 %v188
        %v191 = vmul.f32 %v189, 0.0625
        %v192 = vmul.f32 %v190, 0.0625
        %v193 = vfloor.f32 %v191
        %v194 = vfloor.f32 %v192
        %v195 = vmul.f32 %v193, 16.0
        %v196 = vmul.f32 %v194, 16.0
        %v197 = vsub.f32 %v189, %v195
        %v198 = vsub.f32 %v190, %v196
        %vm199 = vcmp.ge.f32.partialorder %v197, 16.0
        %vm200 = vcmp.ge.f32.partialorder %v198, 16.0
        %vm201 = vcmp.lt.f32.partialorder %v197, 0.0
        %vm202 = vcmp.lt.f32.partialorder %v198, 0.0
        %v203 = vsel %vm199, 1.0, 0.0
        %v204 = vsel %vm200, 1.0, 0.0
        %v205 = vadd.f32 %v193, %v203
        %v206 = vadd.f32 %v194, %v204
        %v207 = vsel %vm201, 1.0, 0.0
        %v208 = vsel %vm202, 1.0, 0.0
        %v209 = vsub.f32 %v205, %v207
        %v210 = vsub.f32 %v206, %v208
        %v211 = vsel %vm199, 16.0, 0.0
        %v212 = vsel %vm200, 16.0, 0.0
        %v213 = vsub.f32 %v197, %v211
        %v214 = vsub.f32 %v198, %v212
        %v215 = vsel %vm201, 16.0, 0.0
        %v216 = vsel %vm202, 16.0, 0.0
        %v217 = vadd.f32 %v213, %v215
        %v218 = vadd.f32 %v214, %v216
        %v220 = vlaneseq
        %v221 = vshrl.u32 %v220, 7
        %v222 = vsub.s32 0, %v221
        %v223 = vrot.slane %v182, %v222
        %v224 = vlaneseq
        %v225 = vshrl.u32 %v224, 7
        %v226 = vsub.s32 2, %v225
        %v227 = vrot.slane %v182, %v226
        %v230 = vadd.f32 %v209, %v223
        %v231 = vadd.f32 %v210, %v227
        %v232 = vrcp.pop 16.0
        %v233 = vmul.f32 %v230, %v232
        %v234 = vmul.f32 %v231, %v232
        %v235 = vsub.f32 %v233, 0.5
        %v236 = vsub.f32 %v234, 0.5
        %v237 = vmul.f32 %v235, 2.0
        %v238 = vmul.f32 %v236, 2.0
        %v239 = vlaneseq
        %v240 = vshrl.u32 %v239, 7
        %v241 = vsub.s32 1, %v240
        %v242 = vrot.slane %v182, %v241
        %v243 = vlaneseq
        %v244 = vshrl.u32 %v243, 7
        %v245 = vsub.s32 3, %v244
        %v246 = vrot.slane %v182, %v245
        %v249 = vadd.f32 %v217, %v242
        %v250 = vadd.f32 %v218, %v246
        %v251 = vmul.f32 %v249, %v232
        %v252 = vmul.f32 %v250, %v232
        %v253 = vsub.f32 %v251, 0.5
        %v254 = vsub.f32 %v252, 0.5
        %v255 = vmul.f32 %v253, 2.0
        %v256 = vmul.f32 %v254, 2.0
        %v257 = vadd.f32 %v237, 1.0
        %v258 = vadd.f32 %v238, 1.0
        %v259 = vmul.f32 %v257, 16.0
        %v260 = vmul.f32 %v258, 16.0
        %v261 = vsub.f32 %v259, 1.0
        %v262 = vsub.f32 %v260, 1.0
        %v263 = vmul.f32 %v261, 0.5
        %v264 = vmul.f32 %v262, 0.5
        %v265 = vadd.f32 %v255, 1.0
        %v266 = vadd.f32 %v256, 1.0
        %v267 = vmul.f32 %v265, 16.0
        %v268 = vmul.f32 %v266, 16.0
        %v269 = vsub.f32 %v267, 1.0
        %v270 = vsub.f32 %v268, 1.0
        %v271 = vmul.f32 %v269, 0.5
        %v272 = vmul.f32 %v270, 0.5
        %v273 = vfloor.f32 %v263
        %v274 = vfloor.f32 %v264
        %v275 = vsub.f32 %v263, %v273
        %v276 = vsub.f32 %v264, %v274
        %v277 = vsub.f32 1.0, %v275
        %v278 = vsub.f32 1.0, %v276
        %v279 = vfloor.f32 %v271
        %v280 = vfloor.f32 %v272
        %v281 = vsub.f32 %v271, %v279
        %v282 = vsub.f32 %v272, %v280
        %v283 = vsub.f32 1.0, %v281
        %v284 = vsub.f32 1.0, %v282
        %v285 = vcvt.f32.s32.to.zero.pseudo %v273
        %v286 = vcvt.f32.s32.to.zero.pseudo %v274
        %v287 = vadd.s32 %v285, 1
        %v288 = vadd.s32 %v286, 1
        %v289 = vcvt.f32.s32.to.zero.pseudo %v279
        %v290 = vcvt.f32.s32.to.zero.pseudo %v280
        %v291 = vadd.s32 %v289, 1
        %v292 = vadd.s32 %v290, 1
        %v293 = vlaneseq
        %v294 = vshrl.u32 %v293, 7
        %v295 = vadd.s32 %v294, 8
        %v296 = vlaneseq
        %v297 = vshrl.u32 %v296, 7
        %v298 = vsub.s32 0, %v297
        %v299 = vrot.slane %v285, %v298
        %v300 = vlaneseq
        %v301 = vshrl.u32 %v300, 7
        %v302 = vsub.s32 0, %v301
        %v303 = vrot.slane %v286, %v302
        %vm304 = vcmp.eq.s32.totalorder %v294, %v299
        %vm305 = vcmp.eq.s32.totalorder %v294, %v303
        %vm306 = vcmp.eq.s32.totalorder %v295, %v299
        %vm307 = vcmp.eq.s32.totalorder %v295, %v303
        %v308 = vlaneseq
        %v309 = vshrl.u32 %v308, 7
        %v310 = vsub.s32 0, %v309
        %v311 = vrot.slane %v277, %v310
        %v312 = vlaneseq
        %v313 = vshrl.u32 %v312, 7
        %v314 = vsub.s32 0, %v313
        %v315 = vrot.slane %v278, %v314
        %v316 = vsel %vm304, %v311, 0.0
        %v317 = vsel %vm305, %v315, 0.0
        %v318 = vsel %vm306, %v311, 0.0
        %v319 = vsel %vm307, %v315, 0.0
        %v320 = vlaneseq
        %v321 = vshrl.u32 %v320, 7
        %v322 = vsub.s32 0, %v321
        %v323 = vrot.slane %v287, %v322
        %v324 = vlaneseq
        %v325 = vshrl.u32 %v324, 7
        %v326 = vsub.s32 0, %v325
        %v327 = vrot.slane %v288, %v326
        %vm328 = vcmp.eq.s32.totalorder %v294, %v323
        %vm329 = vcmp.eq.s32.totalorder %v294, %v327
        %vm330 = vcmp.eq.s32.totalorder %v295, %v323
        %vm331 = vcmp.eq.s32.totalorder %v295, %v327
        %v332 = vlaneseq
        %v333 = vshrl.u32 %v332, 7
        %v334 = vsub.s32 0, %v333
        %v335 = vrot.slane %v275, %v334
        %v336 = vlaneseq
        %v337 = vshrl.u32 %v336, 7
        %v338 = vsub.s32 0, %v337
        %v339 = vrot.slane %v276, %v338
        %v340 = vsel %vm328, %v335, 0.0
        %v341 = vsel %vm329, %v339, 0.0
        %v342 = vsel %vm330, %v335, 0.0
        %v343 = vsel %vm331, %v339, 0.0
        %v344 = vadd.f32 %v316, %v340
        %v345 = vadd.f32 %v317, %v341
        %v346 = vadd.f32 %v318, %v342
        %v347 = vadd.f32 %v319, %v343
        %v348 = vlaneseq
        %v349 = vshrl.u32 %v348, 7
        %v350 = vsub.s32 0, %v349
        %v351 = vrot.slane %v289, %v350
        %v352 = vlaneseq
        %v353 = vshrl.u32 %v352, 7
        %v354 = vsub.s32 0, %v353
        %v355 = vrot.slane %v290, %v354
        %vm356 = vcmp.eq.s32.totalorder %v294, %v351
        %vm357 = vcmp.eq.s32.totalorder %v294, %v355
        %vm358 = vcmp.eq.s32.totalorder %v295, %v351
        %vm359 = vcmp.eq.s32.totalorder %v295, %v355
        %v360 = vlaneseq
        %v361 = vshrl.u32 %v360, 7
        %v362 = vsub.s32 0, %v361
        %v363 = vrot.slane %v283, %v362
        %v364 = vlaneseq
        %v365 = vshrl.u32 %v364, 7
        %v366 = vsub.s32 0, %v365
        %v367 = vrot.slane %v284, %v366
        %v368 = vsel %vm356, %v363, 0.0
        %v369 = vsel %vm357, %v367, 0.0
        %v370 = vsel %vm358, %v363, 0.0
        %v371 = vsel %vm359, %v367, 0.0
        %v372 = vlaneseq
        %v373 = vshrl.u32 %v372, 7
        %v374 = vsub.s32 0, %v373
        %v375 = vrot.slane %v291, %v374
        %v376 = vlaneseq
        %v377 = vshrl.u32 %v376, 7
        %v378 = vsub.s32 0, %v377
        %v379 = vrot.slane %v292, %v378
        %vm380 = vcmp.eq.s32.totalorder %v294, %v375
        %vm381 = vcmp.eq.s32.totalorder %v294, %v379
        %vm382 = vcmp.eq.s32.totalorder %v295, %v375
        %vm383 = vcmp.eq.s32.totalorder %v295, %v379
        %v384 = vlaneseq
        %v385 = vshrl.u32 %v384, 7
        %v386 = vsub.s32 0, %v385
        %v387 = vrot.slane %v281, %v386
        %v388 = vlaneseq
        %v389 = vshrl.u32 %v388, 7
        %v390 = vsub.s32 0, %v389
        %v391 = vrot.slane %v282, %v390
        %v392 = vsel %vm380, %v387, 0.0
        %v393 = vsel %vm381, %v391, 0.0
        %v394 = vsel %vm382, %v387, 0.0
        %v395 = vsel %vm383, %v391, 0.0
        %v396 = vadd.f32 %v368, %v392
        %v397 = vadd.f32 %v369, %v393
        %v398 = vadd.f32 %v370, %v394
        %v399 = vadd.f32 %v371, %v395
        %v400 = vld [vmem:[%s170] sm:$0xff]
        %v401 = vld [vmem:[%s170 + $0x8] sm:$0xff]
        %v402 = vld [vmem:[%s170 + $0x10] sm:$0xff]
        %v403 = vld [vmem:[%s170 + $0x18] sm:$0xff]
        %v404 = vld [vmem:[%s170 + $0x20] sm:$0xff]
        %v405 = vld [vmem:[%s170 + $0x28] sm:$0xff]
        %v406 = vld [vmem:[%s170 + $0x30] sm:$0xff]
        %v407 = vld [vmem:[%s170 + $0x38] sm:$0xff]
        %vm408 = vcmask 130048
        %v410 = vsel %vm408, %v400, 0
        %v413 = vsel %vm408, %v401, 0
        %v416 = vsel %vm408, %v402, 0
        %v419 = vsel %vm408, %v403, 0
        %v422 = vsel %vm408, %v404, 0
        %v425 = vsel %vm408, %v405, 0
        %v428 = vsel %vm408, %v406, 0
        %v431 = vsel %vm408, %v407, 0
        %433 = vmatprep.subr.mxu0 0.0
        %434 = vmatpush1.msra.mxu0 0.0
        %435 = vmatprep.subr.mxu0 0.0
        %436 = vmatpush1.msra.mxu0 0.0
        %437 = vmatprep.subr.mxu0 0.0
        %438 = vmatpush1.msra.mxu0 0.0
        %439 = vmatprep.subr.mxu0 0.0
        %440 = vmatpush1.msra.mxu0 0.0
        %441 = vmatprep.subr.mxu0 0.0
        %442 = vmatpush1.msra.mxu0 0.0
        %443 = vmatprep.subr.mxu0 0.0
        %444 = vmatpush1.msra.mxu0 0.0
        %445 = vmatprep.subr.mxu0 0.0
        %446 = vmatpush1.msra.mxu0 0.0
        %447 = vmatprep.subr.mxu0 0.0
        %448 = vmatpush1.msra.mxu0 0.0
        %449 = vmatprep.subr.mxu0 0.0
        %450 = vmatpush1.msra.mxu0 0.0
        %451 = vmatprep.subr.mxu0 0.0
        %452 = vmatpush1.msra.mxu0 0.0
        %453 = vmatprep.subr.mxu0 0.0
        %454 = vmatpush1.msra.mxu0 0.0
        %455 = vmatprep.subr.mxu0 0.0
        %456 = vmatpush1.msra.mxu0 0.0
        %457 = vmatprep.subr.mxu0 0.0
        %458 = vmatpush1.msra.mxu0 0.0
        %459 = vmatprep.subr.mxu0 0.0
        %460 = vmatpush1.msra.mxu0 0.0
        %461 = vmatprep.subr.mxu0 %v347
        %462 = vmatpush1.msra.mxu0 %v346
        %463 = vmatprep.subr.mxu0 %v345
        %464 = vmatpush1.msra.mxu0 %v344
        %465 = vmatprep.subr.mxu0 0.0
        %466 = vmatpush2.msra.mxu0 0.0
        %467 = vmatprep.subr.mxu0 0.0
        %468 = vmatpush2.msra.mxu0 0.0
        %469 = vmatprep.subr.mxu0 0.0
        %470 = vmatpush2.msra.mxu0 0.0
        %471 = vmatprep.subr.mxu0 0.0
        %472 = vmatpush2.msra.mxu0 0.0
        %473 = vmatprep.subr.mxu0 0.0
        %474 = vmatpush2.msra.mxu0 0.0
        %475 = vmatprep.subr.mxu0 0.0
        %476 = vmatpush2.msra.mxu0 0.0
        %477 = vmatprep.subr.mxu0 0.0
        %478 = vmatpush2.msra.mxu0 0.0
        %479 = vmatprep.subr.mxu0 0.0
        %480 = vmatpush2.msra.mxu0 0.0
        %481 = vmatprep.subr.mxu0 0.0
        %482 = vmatpush2.msra.mxu0 0.0
        %483 = vmatprep.subr.mxu0 0.0
        %484 = vmatpush2.msra.mxu0 0.0
        %485 = vmatprep.subr.mxu0 0.0
        %486 = vmatpush2.msra.mxu0 0.0
        %487 = vmatprep.subr.mxu0 0.0
        %488 = vmatpush2.msra.mxu0 0.0
        %489 = vmatprep.subr.mxu0 0.0
        %490 = vmatpush2.msra.mxu0 0.0
        %491 = vmatprep.subr.mxu0 0.0
        %492 = vmatpush2.msra.mxu0 0.0
        %493 = vmatprep.subr.mxu0 0.0
        %494 = vmatpush2.msra.mxu0 0.0
        %495 = vmatprep.subr.mxu0 0.0
        %496 = vmatpush2.msra.mxu0 0.0
        %497 = vmatprep.mubr.f32.mxu0 0.0
        %498 = vmatmul.mubr.f32.gmra.mxu0 %v410
        %v499 = vpop.f32.mrf.mxu0
        %v500 = vadd.f32 0.0, %v499
        %v501 = vpop.f32.mrf.mxu0
        %v502 = vadd.f32 0.0, %v501
        %503 = vmatprep.mubr.f32.mxu0 0.0
        %504 = vmatmul.mubr.f32.gmra.mxu0 %v413
        %v505 = vpop.f32.mrf.mxu0
        %v506 = vadd.f32 0.0, %v505
        %v507 = vpop.f32.mrf.mxu0
        %v508 = vadd.f32 0.0, %v507
        %509 = vmatprep.mubr.f32.mxu0 0.0
        %510 = vmatmul.mubr.f32.gmra.mxu0 %v416
        %v511 = vpop.f32.mrf.mxu0
        %v512 = vadd.f32 0.0, %v511
        %v513 = vpop.f32.mrf.mxu0
        %v514 = vadd.f32 0.0, %v513
        %515 = vmatprep.mubr.f32.mxu0 0.0
        %516 = vmatmul.mubr.f32.gmra.mxu0 %v419
        %v517 = vpop.f32.mrf.mxu0
        %v518 = vadd.f32 0.0, %v517
        %v519 = vpop.f32.mrf.mxu0
        %v520 = vadd.f32 0.0, %v519
        %521 = vmatprep.mubr.f32.mxu0 0.0
        %522 = vmatmul.mubr.f32.gmra.mxu0 %v422
        %v523 = vpop.f32.mrf.mxu0
        %v524 = vadd.f32 0.0, %v523
        %v525 = vpop.f32.mrf.mxu0
        %v526 = vadd.f32 0.0, %v525
        %527 = vmatprep.mubr.f32.mxu0 0.0
        %528 = vmatmul.mubr.f32.gmra.mxu0 %v425
        %v529 = vpop.f32.mrf.mxu0
        %v530 = vadd.f32 0.0, %v529
        %v531 = vpop.f32.mrf.mxu0
        %v532 = vadd.f32 0.0, %v531
        %533 = vmatprep.mubr.f32.mxu0 0.0
        %534 = vmatmul.mubr.f32.gmra.mxu0 %v428
        %v535 = vpop.f32.mrf.mxu0
        %v536 = vadd.f32 0.0, %v535
        %v537 = vpop.f32.mrf.mxu0
        %v538 = vadd.f32 0.0, %v537
        %539 = vmatprep.mubr.f32.mxu0 0.0
        %540 = vmatmul.mubr.f32.gmra.mxu0 %v431
        %v541 = vpop.f32.mrf.mxu0
        %v542 = vadd.f32 0.0, %v541
        %v543 = vpop.f32.mrf.mxu0
        %v544 = vadd.f32 0.0, %v543
        %545 = vdwg.mxu0
        %v546 = vmul.f32 %v500, %v396
        %v547 = vmul.f32 %v502, %v397
        %v548 = vmul.f32 %v506, %v398
        %v549 = vmul.f32 %v508, %v399
        %v550 = vmul.f32 %v512, %v396
        %v551 = vmul.f32 %v514, %v397
        %v552 = vmul.f32 %v518, %v398
        %v553 = vmul.f32 %v520, %v399
        %v554 = vmul.f32 %v524, %v396
        %v555 = vmul.f32 %v526, %v397
        %v556 = vmul.f32 %v530, %v398
        %v557 = vmul.f32 %v532, %v399
        %v558 = vmul.f32 %v536, %v396
        %v559 = vmul.f32 %v538, %v397
        %v560 = vmul.f32 %v542, %v398
        %v561 = vmul.f32 %v544, %v399
        %v562 = vadd.f32 %v546, %v548
        %v563 = vrot.slane %v562, 4
        %v564 = vadd.f32 %v562, %v563
        %v565 = vrot.slane %v564, 2
        %v566 = vadd.f32 %v564, %v565
        %v567 = vrot.slane %v566, 1
        %v568 = vadd.f32 %v566, %v567
        %v569 = vadd.f32 %v547, %v549
        %v570 = vrot.slane %v569, 4
        %v571 = vadd.f32 %v569, %v570
        %v572 = vrot.slane %v571, 2
        %v573 = vadd.f32 %v571, %v572
        %v574 = vrot.slane %v573, 1
        %v575 = vadd.f32 %v573, %v574
        %v576 = vadd.f32 %v550, %v552
        %v577 = vrot.slane %v576, 4
        %v578 = vadd.f32 %v576, %v577
        %v579 = vrot.slane %v578, 2
        %v580 = vadd.f32 %v578, %v579
        %v581 = vrot.slane %v580, 1
        %v582 = vadd.f32 %v580, %v581
        %v583 = vadd.f32 %v551, %v553
        %v584 = vrot.slane %v583, 4
        %v585 = vadd.f32 %v583, %v584
        %v586 = vrot.slane %v585, 2
        %v587 = vadd.f32 %v585, %v586
        %v588 = vrot.slane %v587, 1
        %v589 = vadd.f32 %v587, %v588
        %v590 = vadd.f32 %v554, %v556
        %v591 = vrot.slane %v590, 4
        %v592 = vadd.f32 %v590, %v591
        %v593 = vrot.slane %v592, 2
        %v594 = vadd.f32 %v592, %v593
        %v595 = vrot.slane %v594, 1
        %v596 = vadd.f32 %v594, %v595
        %v597 = vadd.f32 %v555, %v557
        %v598 = vrot.slane %v597, 4
        %v599 = vadd.f32 %v597, %v598
        %v600 = vrot.slane %v599, 2
        %v601 = vadd.f32 %v599, %v600
        %v602 = vrot.slane %v601, 1
        %v603 = vadd.f32 %v601, %v602
        %v604 = vadd.f32 %v558, %v560
        %v605 = vrot.slane %v604, 4
        %v606 = vadd.f32 %v604, %v605
        %v607 = vrot.slane %v606, 2
        %v608 = vadd.f32 %v606, %v607
        %v609 = vrot.slane %v608, 1
        %v610 = vadd.f32 %v608, %v609
        %v611 = vadd.f32 %v559, %v561
        %v612 = vrot.slane %v611, 4
        %v613 = vadd.f32 %v611, %v612
        %v614 = vrot.slane %v613, 2
        %v615 = vadd.f32 %v613, %v614
        %v616 = vrot.slane %v615, 1
        %v617 = vadd.f32 %v615, %v616
        %v626 = vcombine.low %v568, %v575
        %v627 = vcombine.low %v582, %v589
        %v628 = vcombine.low %v596, %v603
        %v629 = vcombine.low %v610, %v617
        %v630 = vrot.slane %v627, 7
        %vm631 = vcmask 1041409
        %v632 = vsel %vm631, %v630, %v626
        %vm633 = vcmask 1045509
        %v634 = vsel %vm633, %v630, %v632
        %v635 = vrot.slane %v628, 6
        %vm636 = vcmask 1042434
        %v637 = vsel %vm636, %v635, %v634
        %vm638 = vcmask 1046534
        %v639 = vsel %vm638, %v635, %v637
        %v640 = vrot.slane %v629, 5
        %vm641 = vcmask 1043459
        %v642 = vsel %vm641, %v640, %v639
        %vm643 = vcmask 1047559
        %v644 = vsel %vm643, %v640, %v642
        %646 = vst [vmem:[%s165] sm:$0xff] %v644
        %s647 = sand.u32 %s90, 1
        %s648 = scalar_lea.sflag [#allocation3], %s647
        %s649 = sand.u32 %s90, 1
        %s650 = smul.addr %s649, 8
        %s651 = scalar_lea.vmem [#allocation2], %s650
        // Predicated region
        $region29: #{tpu_custom_call.1} parent=27 // pred_check
          %p652 = pneg %p100
        $region30: #{tpu_custom_call.1} parent=27 // pred_check_branch
          %654 = sbr.rel (%p652) target = $region32
        $region31: #{tpu_custom_call.1} parent=27 // pred_region
          %s655 = smul.u32 2, %s21
          %s657 = ssub.s32 128, 128
          %658 = vsyncadd %s648, %s657
          %s659 = smul.addr %s20, 2
          %s660 = sadd.s32 %s655, %s659
          %s661 = smul.addr %s660, 64
          %s662 = scalar_lea.hbm %s2, %s661
          %s664 = sshll.u32 %s651, 4
          %s665 = int_to_ptr.vmem [resolvable:$true] %s664
          %667 = dma.vmem_to_hbm [thread:$0]  %s665, 128, %s662, %s648
        $region32: #{tpu_custom_call.1} parent=27 // pred_fallthru
          _
      $region28: #{tpu_custom_call.1} parent=5 // pred_fallthru
        _
      %p668 = scmp.le.s32.totalorder 2, %s11
      // Predicated region
      $region33: #{tpu_custom_call.1} parent=5 // pred_check
        %p669 = pneg %p668
      $region34: #{tpu_custom_call.1} parent=5 // pred_check_branch
        %671 = sbr.rel (%p669) target = $region36
      $region35: #{tpu_custom_call.1} parent=5 // pred_region
        %s672 = ssub.s32 %s11, 2
        // Predicated region
        $region37: #{tpu_custom_call.1} parent=35 // pred_check
          %p673 = pneg %p106
        $region38: #{tpu_custom_call.1} parent=35 // pred_check_branch
          %675 = sbr.rel (%p673) target = $region40
        $region39: #{tpu_custom_call.1} parent=35 // pred_region
          %s676 = sand.u32 %s91, 1
          %s677 = scalar_lea.sflag [#allocation3], %s676
          %s678 = sand.u32 %s91, 1
          %s679 = smul.addr %s678, 8
          %s680 = scalar_lea.vmem [#allocation2], %s679
          %681 = dma.done %s677, 128
        $region40: #{tpu_custom_call.1} parent=35 // pred_fallthru
          _
      $region36: #{tpu_custom_call.1} parent=5 // pred_fallthru
        _
    $region6: #{tpu_custom_call.1} parent=1 // loop_footer
      %s15 = sadd.s32 1, %s11
    $region7: #{tpu_custom_call.1} parent=1 // loop_footer_branch
      %10 = sbr.rel target = $region3
    $region8: #{tpu_custom_call.1} parent=1 // loop_exit
      _
    %682 = vsyncpa [#allocation3], 1
    %s683 = scalar_lea.sflag [#allocation3], 1
    %684 = vsyncpa %s683, 1

</llo_original>
